<compile_context>
chip_gen: v6e
topology: v6e:2x2x1
jax: 0.10.0
libtpu: 0.0.40
codegen_flags: <defaults>
</compile_context>

<pallas_src>
import jax
import jax.numpy as jnp
from jax.experimental import pallas as pl
from jax.experimental.pallas import tpu as pltpu


def make_rope_tables(dim, max_len=1024):
    """Deterministic cos/sin tables, identical to the PyTorch __init__ (f32)."""
    inv_freq = 1.0 / (10000.0 ** (jnp.arange(0, dim, 2, dtype=jnp.float32) / dim))
    pos_id = jnp.arange(0, max_len, dtype=jnp.float32)
    freqs = pos_id[:, None] * inv_freq[None, :]          # (max_len, dim // 2)
    freqs = jnp.concatenate([freqs, freqs], axis=-1)     # (max_len, dim)
    return jnp.cos(freqs), jnp.sin(freqs)


def _rope_kernel(cos_ref, sin_ref, q_ref, k_ref, qo_ref, ko_ref):
    # cos_ref / sin_ref : (ts, D) float32
    # q_ref / k_ref / qo_ref / ko_ref : (1, ts, H, D) activation dtype
    cos = cos_ref[...][:, None, :]            # (ts, 1, D) -> broadcast over heads
    sin = sin_ref[...][:, None, :]
    half = cos.shape[-1] // 2

    def rope(x):
        x = x.astype(jnp.float32)             # compute in f32, like the reference
        x1 = x[..., :half]
        x2 = x[..., half:]
        rot = jnp.concatenate([-x2, x1], axis=-1)   # rotate_half
        return x * cos + rot * sin

    qo_ref[0] = rope(q_ref[0]).astype(qo_ref.dtype)
    ko_ref[0] = rope(k_ref[0]).astype(ko_ref.dtype)


def _round_down(x, m):
    return (x // m) * m


def _round_up(x, m):
    return ((x + m - 1) // m) * m


def rotary_embedding_pallas(q, k, cos_table, sin_table, *,
                            seq_tile=None, donate_qk=False):
    """Apply RoPE to q, k of shape (B, S, H, D). Returns (q_emb, k_emb)."""
    B, S, H, D = q.shape
    assert k.shape == (B, S, H, D)
    assert D % 2 == 0, "head_dim must be even"
    assert cos_table.shape[-1] == D and sin_table.shape[-1] == D
    assert cos_table.shape[0] >= S and sin_table.shape[0] >= S
    assert q.dtype == k.dtype
    dtype = q.dtype
    act_isz = jnp.dtype(dtype).itemsize

    cos_table = cos_table.astype(jnp.float32)
    sin_table = sin_table.astype(jnp.float32)

    # ---- generation-aware VMEM budget -------------------------------------
    try:
        vmem_cap = int(pltpu.get_tpu_info().vmem_capacity_bytes)
    except Exception:
        vmem_cap = 64 * 1024 * 1024          # assume the smallest (v7x) if unknown
    # Request half of physical, capped at 64 MiB: 64 MiB on v5e/v6e, 32 on v7x.
    vmem_limit = int(min(max(vmem_cap // 2, 16 * 1024 * 1024), 64 * 1024 * 1024))

    # ---- seq-tile size ------------------------------------------------------
    # Live VMEM per step ~= 2 pipeline buffers * (4 activation blocks + 2 f32
    # table blocks); target a few MiB per activation block to amortize the
    # ~0.35 us/step pipeline overhead.
    per_row_bytes = 4 * H * D * act_isz + 2 * D * 4
    ts_vmem = max(8, (vmem_limit * 3 // 4) // (2 * per_row_bytes))
    ts_blk = max(8, (4 * 1024 * 1024) // (H * D * act_isz))     # ~4 MiB / block
    ts = min(ts_vmem, ts_blk)
    if seq_tile is not None:
        ts = min(ts, max(8, int(seq_tile)))
    if ts >= S:
        ts = S
    else:
        ts = max(8, _round_down(ts, 8))
        ts = min(ts, S)
    n_tiles = pl.cdiv(S, ts)

    # v7x megacore: prefer an even number of parallel grid steps so both
    # TensorCores stay busy (no effect on single-core v5e/v6e).
    if (n_tiles * B) % 2 == 1 and S > 8:
        cand_ts = max(8, _round_up(pl.cdiv(S, n_tiles + 1), 8))
        cand_tiles = pl.cdiv(S, cand_ts)
        if (cand_tiles * B) % 2 == 0:
            ts, n_tiles = cand_ts, cand_tiles

    # Table blocks: (ts, D). If ts is a multiple of 8 we can tile the full
    # registered buffers directly (zero per-call prep); otherwise (tiny S not
    # a multiple of 8) pass a full-extent (S, D) slice so the block equals the
    # array dims.
    if ts % 8 == 0:
        cos_in, sin_in = cos_table, sin_table
    else:
        cos_in, sin_in = cos_table[:S], sin_table[:S]

    grid = (n_tiles, B)                      # batch innermost -> table reuse
    act_spec = pl.BlockSpec((1, ts, H, D), lambda s, b: (b, s, 0, 0))
    tbl_spec = pl.BlockSpec((ts, D), lambda s, b: (s, 0))

    n_elems = B * S * H * D
    cost = pl.CostEstimate(
        flops=6 * n_elems,                                   # q & k: ~3 flop/elem
        transcendentals=0,
        bytes_accessed=4 * n_elems * act_isz + 2 * S * D * 4,
    )

    extra = {}
    if donate_qk:
        # q/k buffers are reused for the outputs; only enable when callers
        # can donate q/k (halves peak HBM footprint for long-sequence prefill).
        extra["input_output_aliases"] = {2: 0, 3: 1}

    # NOTE: if xprof ever shows exposed DMA at this tile size, sweep
    # pipeline_mode=pl.Buffered(3) on act_spec — VMEM headroom exists.
    q_emb, k_emb = pl.pallas_call(
        _rope_kernel,
        out_shape=(
            jax.ShapeDtypeStruct((B, S, H, D), dtype),
            jax.ShapeDtypeStruct((B, S, H, D), dtype),
        ),
        grid=grid,
        in_specs=[tbl_spec, tbl_spec, act_spec, act_spec],
        out_specs=(act_spec, act_spec),
        compiler_params=pltpu.CompilerParams(
            dimension_semantics=("parallel", "parallel"),
            vmem_limit_bytes=vmem_limit,
        ),
        cost_estimate=cost,
        **extra,
    )(cos_in, sin_in, q, k)

    return q_emb, k_emb


def _reference_rope(q, k, cos_table, sin_table):
    """Pure-JAX reference matching the PyTorch module (computed in f32)."""
    S = q.shape[1]
    cos = cos_table[None, :S, None, :]
    sin = sin_table[None, :S, None, :]
    half = q.shape[-1] // 2

    def rotate_half(x):
        x1, x2 = x[..., :half], x[..., half:]
        return jnp.concatenate([-x2, x1], axis=-1)

    q_emb = q * cos + rotate_half(q) * sin
    k_emb = k * cos + rotate_half(k) * sin
    return q_emb, k_emb


if __name__ == "__main__":
    # Small but layout-realistic shapes (head_dim = 128 -> lane-dense stores).
    B, S, H, D = 2, 8, 4, 128
    max_len = 64

    key = jax.random.PRNGKey(0)
    kq, kk = jax.random.split(key)
    q = jax.random.normal(kq, (B, S, H, D), dtype=jnp.float32)
    k = jax.random.normal(kk, (B, S, H, D), dtype=jnp.float32)

    cos_table, sin_table = make_rope_tables(D, max_len)

    q_emb, k_emb = rotary_embedding_pallas(q, k, cos_table, sin_table)
    jax.block_until_ready((q_emb, k_emb))

    q_ref, k_ref = _reference_rope(q, k, cos_table, sin_table)
    assert jnp.allclose(q_emb, q_ref, atol=1e-5, rtol=1e-5)
    assert jnp.allclose(k_emb, k_ref, atol=1e-5, rtol=1e-5)

    # Second check: bf16 activations with multiple seq tiles, exercising the
    # (seq_tiles, batch) grid, table-block reuse and f32-compute/bf16-store.
    B2, S2 = 2, 24
    q2 = jax.random.normal(jax.random.PRNGKey(1), (B2, S2, H, D),
                           dtype=jnp.float32).astype(jnp.bfloat16)
    k2 = jax.random.normal(jax.random.PRNGKey(2), (B2, S2, H, D),
                           dtype=jnp.float32).astype(jnp.bfloat16)
    q2_emb, k2_emb = rotary_embedding_pallas(q2, k2, cos_table, sin_table,
                                             seq_tile=8)
    jax.block_until_ready((q2_emb, k2_emb))
    q2_ref, k2_ref = _reference_rope(q2.astype(jnp.float32),
                                     k2.astype(jnp.float32),
                                     cos_table, sin_table)
    assert jnp.allclose(q2_emb.astype(jnp.float32), q2_ref, atol=2e-2, rtol=2e-2)
    assert jnp.allclose(k2_emb.astype(jnp.float32), k2_ref, atol=2e-2, rtol=2e-2)

    print("KERNEL_OK")
</pallas_src>

<mosaic_0001>
module attributes {stable_mosaic.version = 11 : i64} {
  func.func @_rope_kernel(%arg0: i32, %arg1: i32, %arg2: memref<8x128xf32, #tpu.memory_space<vmem>>, %arg3: memref<8x128xf32, #tpu.memory_space<vmem>>, %arg4: memref<1x8x4x128xf32, #tpu.memory_space<vmem>>, %arg5: memref<1x8x4x128xf32, #tpu.memory_space<vmem>>, %arg6: memref<1x8x4x128xf32, #tpu.memory_space<vmem>>, %arg7: memref<1x8x4x128xf32, #tpu.memory_space<vmem>>) attributes {dimension_semantics = [#tpu.dimension_semantics<parallel>, #tpu.dimension_semantics<parallel>], iteration_bounds = array<i64: 1, 2>, scalar_prefetch = 0 : i64, scratch_operands = 0 : i64, tpu.core_type = #tpu.core_type<tc>, window_params = [{transform_indices = @transform_0, window_bounds = array<i64: 8, 128>}, {transform_indices = @transform_1, window_bounds = array<i64: 8, 128>}, {transform_indices = @transform_2, window_bounds = array<i64: 1, 8, 4, 128>}, {transform_indices = @transform_3, window_bounds = array<i64: 1, 8, 4, 128>}, {transform_indices = @transform_4, window_bounds = array<i64: 1, 8, 4, 128>}, {transform_indices = @transform_5, window_bounds = array<i64: 1, 8, 4, 128>}]} {
    %c0 = arith.constant 0 : index
    %c0_0 = arith.constant 0 : index
    %0 = vector.load %arg2[%c0, %c0_0] : memref<8x128xf32, #tpu.memory_space<vmem>>, vector<8x128xf32>
    %1 = vector.shape_cast %0 : vector<8x128xf32> to vector<8x1x128xf32>
    %c0_1 = arith.constant 0 : index
    %c0_2 = arith.constant 0 : index
    %2 = vector.load %arg3[%c0_1, %c0_2] : memref<8x128xf32, #tpu.memory_space<vmem>>, vector<8x128xf32>
    %3 = vector.shape_cast %2 : vector<8x128xf32> to vector<8x1x128xf32>
    %c0_3 = arith.constant 0 : index
    %c0_4 = arith.constant 0 : index
    %c0_5 = arith.constant 0 : index
    %c0_6 = arith.constant 0 : index
    %4 = vector.load %arg4[%c0_3, %c0_4, %c0_5, %c0_6] : memref<1x8x4x128xf32, #tpu.memory_space<vmem>>, vector<1x8x4x128xf32>
    %5 = vector.shape_cast %4 : vector<1x8x4x128xf32> to vector<8x4x128xf32>
    %6 = vector.extract_strided_slice %5 {offsets = [0, 0, 0], sizes = [8, 4, 64], strides = [1, 1, 1]} : vector<8x4x128xf32> to vector<8x4x64xf32>
    %7 = vector.extract_strided_slice %5 {offsets = [0, 0, 64], sizes = [8, 4, 64], strides = [1, 1, 1]} : vector<8x4x128xf32> to vector<8x4x64xf32>
    %cst = arith.constant 0.000000e+00 : f32
    %8 = vector.broadcast %cst : f32 to vector<8x4x64xf32>
    %9 = arith.subf %8, %7 : vector<8x4x64xf32>
    %10 = tpu.concatenate %9, %6 in 2 : vector<8x4x64xf32>, vector<8x4x64xf32> -> vector<8x4x128xf32>
    %11 = vector.broadcast %1 : vector<8x1x128xf32> to vector<8x4x128xf32>
    %12 = arith.mulf %5, %11 : vector<8x4x128xf32>
    %13 = vector.broadcast %3 : vector<8x1x128xf32> to vector<8x4x128xf32>
    %14 = arith.mulf %10, %13 : vector<8x4x128xf32>
    %15 = arith.addf %12, %14 : vector<8x4x128xf32>
    %c0_7 = arith.constant 0 : index
    %c0_8 = arith.constant 0 : index
    %c0_9 = arith.constant 0 : index
    %c0_10 = arith.constant 0 : index
    %16 = vector.load %arg6[%c0_7, %c0_8, %c0_9, %c0_10] : memref<1x8x4x128xf32, #tpu.memory_space<vmem>>, vector<1x8x4x128xf32>
    %17 = vector.shape_cast %16 : vector<1x8x4x128xf32> to vector<8x4x128xf32>
    %18 = vector.shape_cast %15 : vector<8x4x128xf32> to vector<1x8x4x128xf32>
    tpu.vector_store %arg6[%c0_7, %c0_8, %c0_9, %c0_10], %18 {strides = array<i32>} : memref<1x8x4x128xf32, #tpu.memory_space<vmem>>, vector<1x8x4x128xf32>,
    %c0_11 = arith.constant 0 : index
    %c0_12 = arith.constant 0 : index
    %c0_13 = arith.constant 0 : index
    %c0_14 = arith.constant 0 : index
    %19 = vector.load %arg5[%c0_11, %c0_12, %c0_13, %c0_14] : memref<1x8x4x128xf32, #tpu.memory_space<vmem>>, vector<1x8x4x128xf32>
    %20 = vector.shape_cast %19 : vector<1x8x4x128xf32> to vector<8x4x128xf32>
    %21 = vector.extract_strided_slice %20 {offsets = [0, 0, 0], sizes = [8, 4, 64], strides = [1, 1, 1]} : vector<8x4x128xf32> to vector<8x4x64xf32>
    %22 = vector.extract_strided_slice %20 {offsets = [0, 0, 64], sizes = [8, 4, 64], strides = [1, 1, 1]} : vector<8x4x128xf32> to vector<8x4x64xf32>
    %cst_15 = arith.constant 0.000000e+00 : f32
    %23 = vector.broadcast %cst_15 : f32 to vector<8x4x64xf32>
    %24 = arith.subf %23, %22 : vector<8x4x64xf32>
    %25 = tpu.concatenate %24, %21 in 2 : vector<8x4x64xf32>, vector<8x4x64xf32> -> vector<8x4x128xf32>
    %26 = vector.broadcast %1 : vector<8x1x128xf32> to vector<8x4x128xf32>
    %27 = arith.mulf %20, %26 : vector<8x4x128xf32>
    %28 = vector.broadcast %3 : vector<8x1x128xf32> to vector<8x4x128xf32>
    %29 = arith.mulf %25, %28 : vector<8x4x128xf32>
    %30 = arith.addf %27, %29 : vector<8x4x128xf32>
    %c0_16 = arith.constant 0 : index
    %c0_17 = arith.constant 0 : index
    %c0_18 = arith.constant 0 : index
    %c0_19 = arith.constant 0 : index
    %31 = vector.load %arg7[%c0_16, %c0_17, %c0_18, %c0_19] : memref<1x8x4x128xf32, #tpu.memory_space<vmem>>, vector<1x8x4x128xf32>
    %32 = vector.shape_cast %31 : vector<1x8x4x128xf32> to vector<8x4x128xf32>
    %33 = vector.shape_cast %30 : vector<8x4x128xf32> to vector<1x8x4x128xf32>
    tpu.vector_store %arg7[%c0_16, %c0_17, %c0_18, %c0_19], %33 {strides = array<i32>} : memref<1x8x4x128xf32, #tpu.memory_space<vmem>>, vector<1x8x4x128xf32>,
    return
  }
  func.func @transform_0(%arg0: i32, %arg1: i32) -> (i32, i32) {
    %c0_i32 = arith.constant 0 : i32
    %c0_i32_0 = arith.constant 0 : i32
    return %arg0, %c0_i32 : i32, i32
  }
  func.func @transform_1(%arg0: i32, %arg1: i32) -> (i32, i32) {
    %c0_i32 = arith.constant 0 : i32
    %c0_i32_0 = arith.constant 0 : i32
    return %arg0, %c0_i32 : i32, i32
  }
  func.func @transform_2(%arg0: i32, %arg1: i32) -> (i32, i32, i32, i32) {
    %c0_i32 = arith.constant 0 : i32
    %c0_i32_0 = arith.constant 0 : i32
    %c0_i32_1 = arith.constant 0 : i32
    return %arg1, %arg0, %c0_i32, %c0_i32_0 : i32, i32, i32, i32
  }
  func.func @transform_3(%arg0: i32, %arg1: i32) -> (i32, i32, i32, i32) {
    %c0_i32 = arith.constant 0 : i32
    %c0_i32_0 = arith.constant 0 : i32
    %c0_i32_1 = arith.constant 0 : i32
    return %arg1, %arg0, %c0_i32, %c0_i32_0 : i32, i32, i32, i32
  }
  func.func @transform_4(%arg0: i32, %arg1: i32) -> (i32, i32, i32, i32) {
    %c0_i32 = arith.constant 0 : i32
    %c0_i32_0 = arith.constant 0 : i32
    %c0_i32_1 = arith.constant 0 : i32
    return %arg1, %arg0, %c0_i32, %c0_i32_0 : i32, i32, i32, i32
  }
  func.func @transform_5(%arg0: i32, %arg1: i32) -> (i32, i32, i32, i32) {
    %c0_i32 = arith.constant 0 : i32
    %c0_i32_0 = arith.constant 0 : i32
    %c0_i32_1 = arith.constant 0 : i32
    return %arg1, %arg0, %c0_i32, %c0_i32_0 : i32, i32, i32, i32
  }
}

</mosaic_0001>

<llo_original>
// kernel: tpu_custom_call.1
$region0: #{tpu_custom_call.1}
  #allocation0 [shape = 'u32[]', space=smem, size = 0x4, offset = 0x4, fixed_abs, tag = 'smem constant byte address 0x4 - core index']
  #allocation1 [shape = 'u32[144,128]{1,0:T(1,128)}', space=vmem, size = 0x12000, scoped, tag = 'internal scratch']
  %s0 = inlined_call_operand.hbm [shape: f32[64,128], index: 0, kind: input, shape index: {}]
  %s1 = inlined_call_operand.hbm [shape: f32[64,128], index: 1, kind: input, shape index: {}]
  %s2 = inlined_call_operand.hbm [shape: f32[2,8,4,128], index: 2, kind: input, shape index: {}]
  %s3 = inlined_call_operand.hbm [shape: f32[2,8,4,128], index: 3, kind: input, shape index: {}]
  %s4 = inlined_call_operand.hbm [shape: f32[2,8,4,128], index: 4, kind: output, shape index: {0}]
  %s5 = inlined_call_operand.hbm [shape: f32[2,8,4,128], index: 5, kind: output, shape index: {1}]
  %6 = xla_tuple %s4, %s5
  %s7 = sld [smem:[#allocation0]]
  $region73: #{tpu_custom_call.1} parent=0
    _
  %s9 = ssub.s32 1, %s7
  %s10 = scalar_select 0, %s9, %s7
  $region1: #{tpu_custom_call.1} parent=0
    #allocation2 [shape = 'u8[4096]{0}', space=vmem, size = 0x1000, scoped, tag = 'input window, operand 0, single buffered']
    #allocation3 [shape = 's32[2]{0}', space=sflag, size = 0x8, scoped, tag = 'scoped memory for tpu_custom_call.1']
    #allocation4 [shape = 's32[2]{0}', space=sflag, size = 0x8, scoped, tag = 'scoped memory for tpu_custom_call.1']
    #allocation5 [shape = 'u8[4096]{0}', space=vmem, size = 0x1000, scoped, tag = 'input window, operand 1, single buffered']
    #allocation6 [shape = 's32[1]{0}', space=sflag, size = 0x4, scoped, tag = 'scoped memory for tpu_custom_call.1']
    #allocation7 [shape = 'u8[32768]{0}', space=vmem, size = 0x8000, scoped, tag = 'input window, operand 2']
    #allocation8 [shape = 'u8[32768]{0}', space=vmem, size = 0x8000, scoped, tag = 'input window, operand 3']
    #allocation9 [shape = 'u8[32768]{0}', space=vmem, size = 0x8000, scoped, tag = 'output window, operand 0']
    #allocation10 [shape = 'u8[32768]{0}', space=vmem, size = 0x8000, scoped, tag = 'output window, operand 1']
    #allocation11 [shape = 's32[2]{0}', space=sflag, size = 0x8, scoped, tag = 'scoped memory for tpu_custom_call.1']
    %11 = vsyncpa [#allocation3], 0
    %12 = vsyncpa [#allocation6], 0
    %13 = vsyncpa [#allocation4], 0
    %s14 = scalar_lea.sflag [#allocation4], 1
    %15 = vsyncpa %s14, 0
    %16 = vsyncpa [#allocation11], 0
    %s17 = scalar_lea.sflag [#allocation11], 1
    %18 = vsyncpa %s17, 0
    loop: start=0, step=1, limit=4
    $region2: #{tpu_custom_call.1} parent=1 // loop_pre_header
      _
    $region3: #{tpu_custom_call.1} parent=1 // loop_header
      %s20 = sphi 0, %s24
      %p21 = scmp.ge.s32.totalorder %s20, 4
      %s27 = sphi 0, %s39
      %s28 = sphi 0, %s35
      %s29 = sphi 0, %s27
      %s30 = sphi 0, %s28
      %s31 = sphi 0, %s29
      %s32 = sphi 0, %s30
      %s42 = sphi 0, %s44
      %s45 = sphi 0, %s42
      %s46 = sphi 0, %s45
      %s62 = sphi 0, %s46
      %s68 = sphi 0, %s70
      %s71 = sphi 0, %s68
      %s72 = sphi 0, %s71
      %s88 = sphi 0, %s72
      %s96 = sphi 0, %s98
      %s99 = sphi 0, %s96
      %s100 = sphi 0, %s99
      %s116 = sphi 0, %s100
      %s124 = sphi 0, %s126
      %s127 = sphi 0, %s124
      %s128 = sphi 0, %s127
      %s144 = sphi 0, %s128
      %s152 = sphi 0, %s154
      %s155 = sphi 0, %s152
      %s156 = sphi 0, %s155
      %s172 = sphi 0, %s156
      %s180 = sphi 0, %s182
      %s183 = sphi 0, %s180
      %s184 = sphi 0, %s183
      %s200 = sphi 0, %s184
    $region4: #{tpu_custom_call.1} parent=1 // loop_header_branch
      %23 = sbr.rel (%p21) target = $region8
    $region5: #{tpu_custom_call.1} parent=1 // loop_body
      %s25 = ssub.s32 %s20, 1
      %s26 = ssub.s32 %s20, 2
      %s33 = sadd.s32 1, %s28
      %p34 = scmp.ge.s32.totalorder %s33, 2
      %s35 = scalar_select %p34, 0, %s33
      %s36 = sadd.s32 1, %s27
      %s37 = scalar_select %p34, %s36, %s27
      %p38 = scmp.ge.s32.totalorder %s37, 1
      %s39 = scalar_select %p38, 0, %s37
      %s40 = ssub.s32 %s27, %s39
      %p41 = scmp.eq.s32.totalorder %s40, 0
      %s43 = sadd.s32 %s42, 1
      %s44 = scalar_select %p41, %s42, %s43
      %p47 = pneg %p41
      %p48 = scmp.eq.s32.totalorder %s20, 1
      %p49 = por %p47, %p48
      %p50 = scmp.ne.s32.totalorder %s42, %s45
      %p51 = scmp.eq.s32.totalorder %s20, 0
      %p52 = por %p50, %p51
      %p53 = scmp.ne.s32.totalorder %s42, %s45
      %p54 = scmp.eq.s32.totalorder %s25, 1
      %p55 = por %p53, %p54
      %p56 = scmp.ne.s32.totalorder %s45, %s46
      %p57 = scmp.eq.s32.totalorder %s25, 0
      %p58 = por %p56, %p57
      %p59 = scmp.ne.s32.totalorder %s45, %s46
      %p60 = scmp.eq.s32.totalorder %s26, 1
      %p61 = por %p59, %p60
      %p63 = scmp.ne.s32.totalorder %s46, %s62
      %p64 = scmp.eq.s32.totalorder %s26, 0
      %p65 = por %p63, %p64
      %s66 = ssub.s32 %s27, %s39
      %p67 = scmp.eq.s32.totalorder %s66, 0
      %s69 = sadd.s32 %s68, 1
      %s70 = scalar_select %p67, %s68, %s69
      %p73 = pneg %p67
      %p74 = scmp.eq.s32.totalorder %s20, 1
      %p75 = por %p73, %p74
      %p76 = scmp.ne.s32.totalorder %s68, %s71
      %p77 = scmp.eq.s32.totalorder %s20, 0
      %p78 = por %p76, %p77
      %p79 = scmp.ne.s32.totalorder %s68, %s71
      %p80 = scmp.eq.s32.totalorder %s25, 1
      %p81 = por %p79, %p80
      %p82 = scmp.ne.s32.totalorder %s71, %s72
      %p83 = scmp.eq.s32.totalorder %s25, 0
      %p84 = por %p82, %p83
      %p85 = scmp.ne.s32.totalorder %s71, %s72
      %p86 = scmp.eq.s32.totalorder %s26, 1
      %p87 = por %p85, %p86
      %p89 = scmp.ne.s32.totalorder %s72, %s88
      %p90 = scmp.eq.s32.totalorder %s26, 0
      %p91 = por %p89, %p90
      %s92 = ssub.s32 %s28, %s35
      %s93 = ssub.s32 %s27, %s39
      %s94 = sor.u32 %s92, %s93
      %p95 = scmp.eq.s32.totalorder %s94, 0
      %s97 = sadd.s32 %s96, 1
      %s98 = scalar_select %p95, %s96, %s97
      %p101 = pneg %p95
      %p102 = scmp.eq.s32.totalorder %s20, 1
      %p103 = por %p101, %p102
      %p104 = scmp.ne.s32.totalorder %s96, %s99
      %p105 = scmp.eq.s32.totalorder %s20, 0
      %p106 = por %p104, %p105
      %p107 = scmp.ne.s32.totalorder %s96, %s99
      %p108 = scmp.eq.s32.totalorder %s25, 1
      %p109 = por %p107, %p108
      %p110 = scmp.ne.s32.totalorder %s99, %s100
      %p111 = scmp.eq.s32.totalorder %s25, 0
      %p112 = por %p110, %p111
      %p113 = scmp.ne.s32.totalorder %s99, %s100
      %p114 = scmp.eq.s32.totalorder %s26, 1
      %p115 = por %p113, %p114
      %p117 = scmp.ne.s32.totalorder %s100, %s116
      %p118 = scmp.eq.s32.totalorder %s26, 0
      %p119 = por %p117, %p118
      %s120 = ssub.s32 %s28, %s35
      %s121 = ssub.s32 %s27, %s39
      %s122 = sor.u32 %s120, %s121
      %p123 = scmp.eq.s32.totalorder %s122, 0
      %s125 = sadd.s32 %s124, 1
      %s126 = scalar_select %p123, %s124, %s125
      %p129 = pneg %p123
      %p130 = scmp.eq.s32.totalorder %s20, 1
      %p131 = por %p129, %p130
      %p132 = scmp.ne.s32.totalorder %s124, %s127
      %p133 = scmp.eq.s32.totalorder %s20, 0
      %p134 = por %p132, %p133
      %p135 = scmp.ne.s32.totalorder %s124, %s127
      %p136 = scmp.eq.s32.totalorder %s25, 1
      %p137 = por %p135, %p136
      %p138 = scmp.ne.s32.totalorder %s127, %s128
      %p139 = scmp.eq.s32.totalorder %s25, 0
      %p140 = por %p138, %p139
      %p141 = scmp.ne.s32.totalorder %s127, %s128
      %p142 = scmp.eq.s32.totalorder %s26, 1
      %p143 = por %p141, %p142
      %p145 = scmp.ne.s32.totalorder %s128, %s144
      %p146 = scmp.eq.s32.totalorder %s26, 0
      %p147 = por %p145, %p146
      %s148 = ssub.s32 %s28, %s35
      %s149 = ssub.s32 %s27, %s39
      %s150 = sor.u32 %s148, %s149
      %p151 = scmp.eq.s32.totalorder %s150, 0
      %s153 = sadd.s32 %s152, 1
      %s154 = scalar_select %p151, %s152, %s153
      %p157 = pneg %p151
      %p158 = scmp.eq.s32.totalorder %s20, 1
      %p159 = por %p157, %p158
      %p160 = scmp.ne.s32.totalorder %s152, %s155
      %p161 = scmp.eq.s32.totalorder %s20, 0
      %p162 = por %p160, %p161
      %p163 = scmp.ne.s32.totalorder %s152, %s155
      %p164 = scmp.eq.s32.totalorder %s25, 1
      %p165 = por %p163, %p164
      %p166 = scmp.ne.s32.totalorder %s155, %s156
      %p167 = scmp.eq.s32.totalorder %s25, 0
      %p168 = por %p166, %p167
      %p169 = scmp.ne.s32.totalorder %s155, %s156
      %p170 = scmp.eq.s32.totalorder %s26, 1
      %p171 = por %p169, %p170
      %p173 = scmp.ne.s32.totalorder %s156, %s172
      %p174 = scmp.eq.s32.totalorder %s26, 0
      %p175 = por %p173, %p174
      %s176 = ssub.s32 %s28, %s35
      %s177 = ssub.s32 %s27, %s39
      %s178 = sor.u32 %s176, %s177
      %p179 = scmp.eq.s32.totalorder %s178, 0
      %s181 = sadd.s32 %s180, 1
      %s182 = scalar_select %p179, %s180, %s181
      %p185 = pneg %p179
      %p186 = scmp.eq.s32.totalorder %s20, 1
      %p187 = por %p185, %p186
      %p188 = scmp.ne.s32.totalorder %s180, %s183
      %p189 = scmp.eq.s32.totalorder %s20, 0
      %p190 = por %p188, %p189
      %p191 = scmp.ne.s32.totalorder %s180, %s183
      %p192 = scmp.eq.s32.totalorder %s25, 1
      %p193 = por %p191, %p192
      %p194 = scmp.ne.s32.totalorder %s183, %s184
      %p195 = scmp.eq.s32.totalorder %s25, 0
      %p196 = por %p194, %p195
      %p197 = scmp.ne.s32.totalorder %s183, %s184
      %p198 = scmp.eq.s32.totalorder %s26, 1
      %p199 = por %p197, %p198
      %p201 = scmp.ne.s32.totalorder %s184, %s200
      %p202 = scmp.eq.s32.totalorder %s26, 0
      %p203 = por %p201, %p202
      %p204 = scmp.le.s32.totalorder 1, %s20
      %p205 = scmp.lt.s32.totalorder %s20, 3
      %p206 = pnand %p204, %p205
      %p207 = pneg %p206
      // Predicated region
      $region9: #{tpu_custom_call.1} parent=5 // pred_check
        _
      $region10: #{tpu_custom_call.1} parent=5 // pred_check_branch
        %209 = sbr.rel (%p206) target = $region12
      $region11: #{tpu_custom_call.1} parent=5 // pred_region
        %s210 = ssub.s32 %s20, 1
        // Predicated region
        $region13: #{tpu_custom_call.1} parent=11 // pred_check
          %p211 = pneg %p58
        $region14: #{tpu_custom_call.1} parent=11 // pred_check_branch
          %213 = sbr.rel (%p211) target = $region16
        $region15: #{tpu_custom_call.1} parent=11 // pred_region
          %s215 = ssub.s32 128, 128
          %216 = vsyncadd [#allocation3], %s215
          %s217 = smul.addr %s29, 128
          %s218 = scalar_lea.hbm %s0, %s217
          %s220 = sshll.u32 [#allocation2], 4
          %s221 = int_to_ptr.vmem [resolvable:$true] %s220
          %223 = dma.hbm_to_vmem [thread:$0]  %s218, 128, %s221, [#allocation3]
        $region16: #{tpu_custom_call.1} parent=11 // pred_fallthru
          _
        // Predicated region
        $region17: #{tpu_custom_call.1} parent=11 // pred_check
          %p224 = pneg %p84
        $region18: #{tpu_custom_call.1} parent=11 // pred_check_branch
          %226 = sbr.rel (%p224) target = $region20
        $region19: #{tpu_custom_call.1} parent=11 // pred_region
          %s228 = ssub.s32 128, 128
          %229 = vsyncadd [#allocation6], %s228
          %s230 = smul.addr %s29, 128
          %s231 = scalar_lea.hbm %s1, %s230
          %s233 = sshll.u32 [#allocation5], 4
          %s234 = int_to_ptr.vmem [resolvable:$true] %s233
          %236 = dma.hbm_to_vmem [thread:$0]  %s231, 128, %s234, [#allocation6]
        $region20: #{tpu_custom_call.1} parent=11 // pred_fallthru
          _
      $region12: #{tpu_custom_call.1} parent=5 // pred_fallthru
        _
      %p237 = scmp.lt.s32.totalorder %s20, 2
      // Predicated region
      $region21: #{tpu_custom_call.1} parent=5 // pred_check
        %p238 = pneg %p237
      $region22: #{tpu_custom_call.1} parent=5 // pred_check_branch
        %240 = sbr.rel (%p238) target = $region24
      $region23: #{tpu_custom_call.1} parent=5 // pred_region
        // Predicated region
        $region25: #{tpu_custom_call.1} parent=23 // pred_check
          %p241 = pneg %p106
        $region26: #{tpu_custom_call.1} parent=23 // pred_check_branch
          %243 = sbr.rel (%p241) target = $region28
        $region27: #{tpu_custom_call.1} parent=23 // pred_region
          %s244 = sand.u32 %s20, 1
          %s245 = scalar_lea.sflag [#allocation3], %s244
          %s246 = sand.u32 %s96, 1
          %s247 = smul.addr %s246, 32
          %s248 = scalar_lea.vmem [#allocation7], %s247
          %s249 = smul.u32 8, %s27
          %s251 = ssub.s32 512, 512
          %252 = vsyncadd %s245, %s251
          %s253 = smul.addr %s28, 8
          %s254 = sadd.s32 %s249, %s253
          %s255 = smul.addr %s254, 64
          %s256 = scalar_lea.hbm %s2, %s255
          %s257 = sshll.u32 %s248, 4
          %s258 = int_to_ptr.vmem [resolvable:$true] %s257
          %263 = dma.hbm_to_vmem [thread:$0]  %s256, 512, %s258, %s245, 64, 64, 4
        $region28: #{tpu_custom_call.1} parent=23 // pred_fallthru
          _
        // Predicated region
        $region29: #{tpu_custom_call.1} parent=23 // pred_check
          %p264 = pneg %p134
        $region30: #{tpu_custom_call.1} parent=23 // pred_check_branch
          %266 = sbr.rel (%p264) target = $region32
        $region31: #{tpu_custom_call.1} parent=23 // pred_region
          %s267 = sand.u32 %s20, 1
          %s268 = scalar_lea.sflag [#allocation3], %s267
          %s269 = sand.u32 %s124, 1
          %s270 = smul.addr %s269, 32
          %s271 = scalar_lea.vmem [#allocation8], %s270
          %s272 = smul.u32 8, %s27
          %s274 = ssub.s32 512, 512
          %275 = vsyncadd %s268, %s274
          %s276 = smul.addr %s28, 8
          %s277 = sadd.s32 %s272, %s276
          %s278 = smul.addr %s277, 64
          %s279 = scalar_lea.hbm %s3, %s278
          %s280 = sshll.u32 %s271, 4
          %s281 = int_to_ptr.vmem [resolvable:$true] %s280
          %286 = dma.hbm_to_vmem [thread:$0]  %s279, 512, %s281, %s268, 64, 64, 4
        $region32: #{tpu_custom_call.1} parent=23 // pred_fallthru
          _
      $region24: #{tpu_custom_call.1} parent=5 // pred_fallthru
        _
      %p287 = scmp.le.s32.totalorder 1, %s20
      %p288 = scmp.lt.s32.totalorder %s20, 3
      %p289 = pnand %p287, %p288
      %p290 = pneg %p289
      // Predicated region
      $region33: #{tpu_custom_call.1} parent=5 // pred_check
        _
      $region34: #{tpu_custom_call.1} parent=5 // pred_check_branch
        %292 = sbr.rel (%p289) target = $region36
      $region35: #{tpu_custom_call.1} parent=5 // pred_region
        %s293 = ssub.s32 %s20, 1
        // Predicated region
        $region37: #{tpu_custom_call.1} parent=35 // pred_check
          %p294 = pneg %p58
        $region38: #{tpu_custom_call.1} parent=35 // pred_check_branch
          %296 = sbr.rel (%p294) target = $region40
        $region39: #{tpu_custom_call.1} parent=35 // pred_region
          %297 = dma.done [#allocation3], 128
        $region40: #{tpu_custom_call.1} parent=35 // pred_fallthru
          _
        // Predicated region
        $region41: #{tpu_custom_call.1} parent=35 // pred_check
          %p298 = pneg %p84
        $region42: #{tpu_custom_call.1} parent=35 // pred_check_branch
          %300 = sbr.rel (%p298) target = $region44
        $region43: #{tpu_custom_call.1} parent=35 // pred_region
          %301 = dma.done [#allocation6], 128
        $region44: #{tpu_custom_call.1} parent=35 // pred_fallthru
          _
        %s302 = sand.u32 %s25, 1
        %s303 = scalar_lea.sflag [#allocation3], %s302
        %s304 = sand.u32 %s99, 1
        %s305 = smul.addr %s304, 32
        %s306 = scalar_lea.vmem [#allocation7], %s305
        // Predicated region
        $region45: #{tpu_custom_call.1} parent=35 // pred_check
          %p307 = pneg %p112
        $region46: #{tpu_custom_call.1} parent=35 // pred_check_branch
          %309 = sbr.rel (%p307) target = $region48
        $region47: #{tpu_custom_call.1} parent=35 // pred_region
          %310 = dma.done %s303, 512
        $region48: #{tpu_custom_call.1} parent=35 // pred_fallthru
          _
        %s311 = sand.u32 %s25, 1
        %s312 = scalar_lea.sflag [#allocation3], %s311
        %s313 = sand.u32 %s127, 1
        %s314 = smul.addr %s313, 32
        %s315 = scalar_lea.vmem [#allocation8], %s314
        // Predicated region
        $region49: #{tpu_custom_call.1} parent=35 // pred_check
          %p316 = pneg %p140
        $region50: #{tpu_custom_call.1} parent=35 // pred_check_branch
          %318 = sbr.rel (%p316) target = $region52
        $region51: #{tpu_custom_call.1} parent=35 // pred_region
          %319 = dma.done %s312, 512
        $region52: #{tpu_custom_call.1} parent=35 // pred_fallthru
          _
        %p320 = pneg %p58
        %p321 = pneg %p55
        %p322 = pneg %p84
        %p323 = pneg %p81
        %s324 = sand.u32 %s25, 1
        %s325 = scalar_lea.sflag [#allocation3], %s324
        %s326 = sand.u32 %s99, 1
        %s327 = smul.addr %s326, 32
        %s328 = scalar_lea.vmem [#allocation7], %s327
        %p329 = pneg %p112
        %p330 = pneg %p109
        %s331 = sand.u32 %s25, 1
        %s332 = scalar_lea.sflag [#allocation3], %s331
        %s333 = sand.u32 %s127, 1
        %s334 = smul.addr %s333, 32
        %s335 = scalar_lea.vmem [#allocation8], %s334
        %p336 = pneg %p140
        %p337 = pneg %p137
        %p338 = pneg %p168
        %p339 = pneg %p165
        %s340 = sand.u32 %s155, 1
        %s341 = scalar_lea.sflag [#allocation4], %s340
        %s342 = sand.u32 %s155, 1
        %s343 = smul.addr %s342, 32
        %s344 = scalar_lea.vmem [#allocation9], %s343
        %p345 = pneg %p196
        %p346 = pneg %p193
        %s347 = sand.u32 %s183, 1
        %s348 = scalar_lea.sflag [#allocation11], %s347
        %s349 = sand.u32 %s183, 1
        %s350 = smul.addr %s349, 32
        %s351 = scalar_lea.vmem [#allocation10], %s350
        %s352 = smul.u32 8, %s29
        %s353 = smul.u32 8, %s29
        %s354 = smul.u32 8, %s29
        %s355 = smul.u32 8, %s29
        %v356 = vld [vmem:[#allocation2] sm:$0xff]
        %v358 = vcombine.high %v356, %v356
        %v360 = vunpack.c.l.s4 1966171168
        %v361 = vunpack.c.0.s8 %v360
        %v362 = vlaneseq
        %v363 = vshrl.u32 %v362, 7
        %v364 = vsub.s32 %v361, %v363
        %v365 = vrot.slane %v356, %v364
        %v367 = vunpack.c.l.s4 1966171168
        %v368 = vunpack.c.0.s8 %v367
        %v369 = vlaneseq
        %v370 = vshrl.u32 %v369, 7
        %v371 = vsub.s32 %v368, %v370
        %v372 = vrot.slane %v358, %v371
        %v373 = vcombine.high %v365, %v365
        %v374 = vcombine.high %v372, %v372
        %v376 = vunpack.c.l.s4 1966171168
        %v377 = vunpack.c.0.s8 %v376
        %v378 = vlaneseq
        %v379 = vshrl.u32 %v378, 7
        %v380 = vsub.s32 %v377, %v379
        %v381 = vrot.slane %v365, %v380
        %v383 = vunpack.c.l.s4 1966171168
        %v384 = vunpack.c.0.s8 %v383
        %v385 = vlaneseq
        %v386 = vshrl.u32 %v385, 7
        %v387 = vsub.s32 %v384, %v386
        %v388 = vrot.slane %v372, %v387
        %v390 = vunpack.c.l.s4 1966171168
        %v391 = vunpack.c.0.s8 %v390
        %v392 = vlaneseq
        %v393 = vshrl.u32 %v392, 7
        %v394 = vsub.s32 %v391, %v393
        %v395 = vrot.slane %v373, %v394
        %v397 = vunpack.c.l.s4 1966171168
        %v398 = vunpack.c.0.s8 %v397
        %v399 = vlaneseq
        %v400 = vshrl.u32 %v399, 7
        %v401 = vsub.s32 %v398, %v400
        %v402 = vrot.slane %v374, %v401
        %v403 = vcombine.high %v381, %v381
        %v404 = vcombine.high %v388, %v388
        %v405 = vcombine.high %v395, %v395
        %v406 = vcombine.high %v402, %v402
        %v407 = vld [vmem:[#allocation5] sm:$0xff]
        %v409 = vcombine.high %v407, %v407
        %v411 = vunpack.c.l.s4 1966171168
        %v412 = vunpack.c.0.s8 %v411
        %v413 = vlaneseq
        %v414 = vshrl.u32 %v413, 7
        %v415 = vsub.s32 %v412, %v414
        %v416 = vrot.slane %v407, %v415
        %v418 = vunpack.c.l.s4 1966171168
        %v419 = vunpack.c.0.s8 %v418
        %v420 = vlaneseq
        %v421 = vshrl.u32 %v420, 7
        %v422 = vsub.s32 %v419, %v421
        %v423 = vrot.slane %v409, %v422
        %v424 = vcombine.high %v416, %v416
        %v425 = vcombine.high %v423, %v423
        %v427 = vunpack.c.l.s4 1966171168
        %v428 = vunpack.c.0.s8 %v427
        %v429 = vlaneseq
        %v430 = vshrl.u32 %v429, 7
        %v431 = vsub.s32 %v428, %v430
        %v432 = vrot.slane %v416, %v431
        %v434 = vunpack.c.l.s4 1966171168
        %v435 = vunpack.c.0.s8 %v434
        %v436 = vlaneseq
        %v437 = vshrl.u32 %v436, 7
        %v438 = vsub.s32 %v435, %v437
        %v439 = vrot.slane %v423, %v438
        %v441 = vunpack.c.l.s4 1966171168
        %v442 = vunpack.c.0.s8 %v441
        %v443 = vlaneseq
        %v444 = vshrl.u32 %v443, 7
        %v445 = vsub.s32 %v442, %v444
        %v446 = vrot.slane %v424, %v445
        %v448 = vunpack.c.l.s4 1966171168
        %v449 = vunpack.c.0.s8 %v448
        %v450 = vlaneseq
        %v451 = vshrl.u32 %v450, 7
        %v452 = vsub.s32 %v449, %v451
        %v453 = vrot.slane %v425, %v452
        %v454 = vcombine.high %v432, %v432
        %v455 = vcombine.high %v439, %v439
        %v456 = vcombine.high %v446, %v446
        %v457 = vcombine.high %v453, %v453
        %v458 = vld [vmem:[%s306] sm:$0xf]
        %v459 = vld [vmem:[%s306 + $0x4] sm:$0xf]
        %v460 = vld [vmem:[%s306 + $0x8] sm:$0xf]
        %v461 = vld [vmem:[%s306 + $0xc] sm:$0xf]
        %v462 = vld [vmem:[%s306 + $0x10] sm:$0xf]
        %v463 = vld [vmem:[%s306 + $0x14] sm:$0xf]
        %v464 = vld [vmem:[%s306 + $0x18] sm:$0xf]
        %v465 = vld [vmem:[%s306 + $0x1c] sm:$0xf]
        %v466 = vsub.f32 0.0, %v458
        %v467 = vsub.f32 0.0, %v459
        %v468 = vsub.f32 0.0, %v460
        %v469 = vsub.f32 0.0, %v461
        %v470 = vsub.f32 0.0, %v462
        %v471 = vsub.f32 0.0, %v463
        %v472 = vsub.f32 0.0, %v464
        %v473 = vsub.f32 0.0, %v465
        %482 = vrot.lane.b32.xlu0 %v466, 64
        %v483 = vpop.permute.xlu0 %482
        %484 = vrot.lane.b32.xlu0 %v467, 64
        %v485 = vpop.permute.xlu0 %484
        %486 = vrot.lane.b32.xlu0 %v468, 64
        %v487 = vpop.permute.xlu0 %486
        %488 = vrot.lane.b32.xlu0 %v469, 64
        %v489 = vpop.permute.xlu0 %488
        %490 = vrot.lane.b32.xlu0 %v470, 64
        %v491 = vpop.permute.xlu0 %490
        %492 = vrot.lane.b32.xlu0 %v471, 64
        %v493 = vpop.permute.xlu0 %492
        %494 = vrot.lane.b32.xlu0 %v472, 64
        %v495 = vpop.permute.xlu0 %494
        %496 = vrot.lane.b32.xlu0 %v473, 64
        %v497 = vpop.permute.xlu0 %496
        %514 = vrot.lane.b32.xlu0 %v458, 64
        %v515 = vpop.permute.xlu0 %514
        %516 = vrot.lane.b32.xlu0 %v459, 64
        %v517 = vpop.permute.xlu0 %516
        %518 = vrot.lane.b32.xlu0 %v460, 64
        %v519 = vpop.permute.xlu0 %518
        %520 = vrot.lane.b32.xlu0 %v461, 64
        %v521 = vpop.permute.xlu0 %520
        %522 = vrot.lane.b32.xlu0 %v462, 64
        %v523 = vpop.permute.xlu0 %522
        %524 = vrot.lane.b32.xlu0 %v463, 64
        %v525 = vpop.permute.xlu0 %524
        %526 = vrot.lane.b32.xlu0 %v464, 64
        %v527 = vpop.permute.xlu0 %526
        %528 = vrot.lane.b32.xlu0 %v465, 64
        %v529 = vpop.permute.xlu0 %528
        %vm538 = vcmask 523264
        %v539 = vsel %vm538, %v483, %v515
        %v540 = vsel %vm538, %v485, %v517
        %v541 = vsel %vm538, %v487, %v519
        %v542 = vsel %vm538, %v489, %v521
        %v543 = vsel %vm538, %v491, %v523
        %v544 = vsel %vm538, %v493, %v525
        %v545 = vsel %vm538, %v495, %v527
        %v546 = vsel %vm538, %v497, %v529
        %v547 = vlaneseq
        %v548 = vshrl.u32 %v547, 7
        %v549 = vsub.s32 0, %v548
        %v550 = vrot.slane %v381, %v549
        %v551 = vlaneseq
        %v552 = vshrl.u32 %v551, 7
        %v553 = vsub.s32 0, %v552
        %v554 = vrot.slane %v395, %v553
        %v555 = vlaneseq
        %v556 = vshrl.u32 %v555, 7
        %v557 = vsub.s32 0, %v556
        %v558 = vrot.slane %v403, %v557
        %v559 = vlaneseq
        %v560 = vshrl.u32 %v559, 7
        %v561 = vsub.s32 0, %v560
        %v562 = vrot.slane %v405, %v561
        %v563 = vlaneseq
        %v564 = vshrl.u32 %v563, 7
        %v565 = vsub.s32 0, %v564
        %v566 = vrot.slane %v388, %v565
        %v567 = vlaneseq
        %v568 = vshrl.u32 %v567, 7
        %v569 = vsub.s32 0, %v568
        %v570 = vrot.slane %v402, %v569
        %v571 = vlaneseq
        %v572 = vshrl.u32 %v571, 7
        %v573 = vsub.s32 0, %v572
        %v574 = vrot.slane %v404, %v573
        %v575 = vlaneseq
        %v576 = vshrl.u32 %v575, 7
        %v577 = vsub.s32 0, %v576
        %v578 = vrot.slane %v406, %v577
        %v587 = vmul.f32 %v458, %v550
        %v588 = vmul.f32 %v459, %v554
        %v589 = vmul.f32 %v460, %v558
        %v590 = vmul.f32 %v461, %v562
        %v591 = vmul.f32 %v462, %v566
        %v592 = vmul.f32 %v463, %v570
        %v593 = vmul.f32 %v464, %v574
        %v594 = vmul.f32 %v465, %v578
        %v595 = vlaneseq
        %v596 = vshrl.u32 %v595, 7
        %v597 = vsub.s32 0, %v596
        %v598 = vrot.slane %v432, %v597
        %v599 = vlaneseq
        %v600 = vshrl.u32 %v599, 7
        %v601 = vsub.s32 0, %v600
        %v602 = vrot.slane %v446, %v601
        %v603 = vlaneseq
        %v604 = vshrl.u32 %v603, 7
        %v605 = vsub.s32 0, %v604
        %v606 = vrot.slane %v454, %v605
        %v607 = vlaneseq
        %v608 = vshrl.u32 %v607, 7
        %v609 = vsub.s32 0, %v608
        %v610 = vrot.slane %v456, %v609
        %v611 = vlaneseq
        %v612 = vshrl.u32 %v611, 7
        %v613 = vsub.s32 0, %v612
        %v614 = vrot.slane %v439, %v613
        %v615 = vlaneseq
        %v616 = vshrl.u32 %v615, 7
        %v617 = vsub.s32 0, %v616
        %v618 = vrot.slane %v453, %v617
        %v619 = vlaneseq
        %v620 = vshrl.u32 %v619, 7
        %v621 = vsub.s32 0, %v620
        %v622 = vrot.slane %v455, %v621
        %v623 = vlaneseq
        %v624 = vshrl.u32 %v623, 7
        %v625 = vsub.s32 0, %v624
        %v626 = vrot.slane %v457, %v625
        %v635 = vmul.f32 %v539, %v598
        %v636 = vmul.f32 %v540, %v602
        %v637 = vmul.f32 %v541, %v606
        %v638 = vmul.f32 %v542, %v610
        %v639 = vmul.f32 %v543, %v614
        %v640 = vmul.f32 %v544, %v618
        %v641 = vmul.f32 %v545, %v622
        %v642 = vmul.f32 %v546, %v626
        %v643 = vadd.f32 %v587, %v635
        %v644 = vadd.f32 %v588, %v636
        %v645 = vadd.f32 %v589, %v637
        %v646 = vadd.f32 %v590, %v638
        %v647 = vadd.f32 %v591, %v639
        %v648 = vadd.f32 %v592, %v640
        %v649 = vadd.f32 %v593, %v641
        %v650 = vadd.f32 %v594, %v642
        %651 = vst [vmem:[%s344] sm:$0xf] %v643
        %652 = vst [vmem:[%s344 + $0x4] sm:$0xf] %v644
        %653 = vst [vmem:[%s344 + $0x8] sm:$0xf] %v645
        %654 = vst [vmem:[%s344 + $0xc] sm:$0xf] %v646
        %655 = vst [vmem:[%s344 + $0x10] sm:$0xf] %v647
        %656 = vst [vmem:[%s344 + $0x14] sm:$0xf] %v648
        %657 = vst [vmem:[%s344 + $0x18] sm:$0xf] %v649
        %658 = vst [vmem:[%s344 + $0x1c] sm:$0xf] %v650
        %v659 = vld [vmem:[%s315] sm:$0xf]
        %v660 = vld [vmem:[%s315 + $0x4] sm:$0xf]
        %v661 = vld [vmem:[%s315 + $0x8] sm:$0xf]
        %v662 = vld [vmem:[%s315 + $0xc] sm:$0xf]
        %v663 = vld [vmem:[%s315 + $0x10] sm:$0xf]
        %v664 = vld [vmem:[%s315 + $0x14] sm:$0xf]
        %v665 = vld [vmem:[%s315 + $0x18] sm:$0xf]
        %v666 = vld [vmem:[%s315 + $0x1c] sm:$0xf]
        %v667 = vsub.f32 0.0, %v659
        %v668 = vsub.f32 0.0, %v660
        %v669 = vsub.f32 0.0, %v661
        %v670 = vsub.f32 0.0, %v662
        %v671 = vsub.f32 0.0, %v663
        %v672 = vsub.f32 0.0, %v664
        %v673 = vsub.f32 0.0, %v665
        %v674 = vsub.f32 0.0, %v666
        %683 = vrot.lane.b32.xlu0 %v667, 64
        %v684 = vpop.permute.xlu0 %683
        %685 = vrot.lane.b32.xlu0 %v668, 64
        %v686 = vpop.permute.xlu0 %685
        %687 = vrot.lane.b32.xlu0 %v669, 64
        %v688 = vpop.permute.xlu0 %687
        %689 = vrot.lane.b32.xlu0 %v670, 64
        %v690 = vpop.permute.xlu0 %689
        %691 = vrot.lane.b32.xlu0 %v671, 64
        %v692 = vpop.permute.xlu0 %691
        %693 = vrot.lane.b32.xlu0 %v672, 64
        %v694 = vpop.permute.xlu0 %693
        %695 = vrot.lane.b32.xlu0 %v673, 64
        %v696 = vpop.permute.xlu0 %695
        %697 = vrot.lane.b32.xlu0 %v674, 64
        %v698 = vpop.permute.xlu0 %697
        %715 = vrot.lane.b32.xlu0 %v659, 64
        %v716 = vpop.permute.xlu0 %715
        %717 = vrot.lane.b32.xlu0 %v660, 64
        %v718 = vpop.permute.xlu0 %717
        %719 = vrot.lane.b32.xlu0 %v661, 64
        %v720 = vpop.permute.xlu0 %719
        %721 = vrot.lane.b32.xlu0 %v662, 64
        %v722 = vpop.permute.xlu0 %721
        %723 = vrot.lane.b32.xlu0 %v663, 64
        %v724 = vpop.permute.xlu0 %723
        %725 = vrot.lane.b32.xlu0 %v664, 64
        %v726 = vpop.permute.xlu0 %725
        %727 = vrot.lane.b32.xlu0 %v665, 64
        %v728 = vpop.permute.xlu0 %727
        %729 = vrot.lane.b32.xlu0 %v666, 64
        %v730 = vpop.permute.xlu0 %729
        %v739 = vsel %vm538, %v684, %v716
        %v740 = vsel %vm538, %v686, %v718
        %v741 = vsel %vm538, %v688, %v720
        %v742 = vsel %vm538, %v690, %v722
        %v743 = vsel %vm538, %v692, %v724
        %v744 = vsel %vm538, %v694, %v726
        %v745 = vsel %vm538, %v696, %v728
        %v746 = vsel %vm538, %v698, %v730
        %v747 = vmul.f32 %v659, %v550
        %v748 = vmul.f32 %v660, %v554
        %v749 = vmul.f32 %v661, %v558
        %v750 = vmul.f32 %v662, %v562
        %v751 = vmul.f32 %v663, %v566
        %v752 = vmul.f32 %v664, %v570
        %v753 = vmul.f32 %v665, %v574
        %v754 = vmul.f32 %v666, %v578
        %v755 = vmul.f32 %v739, %v598
        %v756 = vmul.f32 %v740, %v602
        %v757 = vmul.f32 %v741, %v606
        %v758 = vmul.f32 %v742, %v610
        %v759 = vmul.f32 %v743, %v614
        %v760 = vmul.f32 %v744, %v618
        %v761 = vmul.f32 %v745, %v622
        %v762 = vmul.f32 %v746, %v626
        %v763 = vadd.f32 %v747, %v755
        %v764 = vadd.f32 %v748, %v756
        %v765 = vadd.f32 %v749, %v757
        %v766 = vadd.f32 %v750, %v758
        %v767 = vadd.f32 %v751, %v759
        %v768 = vadd.f32 %v752, %v760
        %v769 = vadd.f32 %v753, %v761
        %v770 = vadd.f32 %v754, %v762
        %771 = vst [vmem:[%s351] sm:$0xf] %v763
        %772 = vst [vmem:[%s351 + $0x4] sm:$0xf] %v764
        %773 = vst [vmem:[%s351 + $0x8] sm:$0xf] %v765
        %774 = vst [vmem:[%s351 + $0xc] sm:$0xf] %v766
        %775 = vst [vmem:[%s351 + $0x10] sm:$0xf] %v767
        %776 = vst [vmem:[%s351 + $0x14] sm:$0xf] %v768
        %777 = vst [vmem:[%s351 + $0x18] sm:$0xf] %v769
        %778 = vst [vmem:[%s351 + $0x1c] sm:$0xf] %v770
        %s779 = sand.u32 %s155, 1
        %s780 = scalar_lea.sflag [#allocation4], %s779
        %s781 = sand.u32 %s155, 1
        %s782 = smul.addr %s781, 32
        %s783 = scalar_lea.vmem [#allocation9], %s782
        %s784 = sand.u32 %s183, 1
        %s785 = scalar_lea.sflag [#allocation11], %s784
        %s786 = sand.u32 %s183, 1
        %s787 = smul.addr %s786, 32
        %s788 = scalar_lea.vmem [#allocation10], %s787
        // Predicated region
        $region53: #{tpu_custom_call.1} parent=35 // pred_check
          %p789 = pneg %p165
        $region54: #{tpu_custom_call.1} parent=35 // pred_check_branch
          %791 = sbr.rel (%p789) target = $region56
        $region55: #{tpu_custom_call.1} parent=35 // pred_region
          %s792 = smul.u32 8, %s29
          %s794 = ssub.s32 512, 512
          %795 = vsyncadd %s780, %s794
          %s796 = smul.addr %s30, 8
          %s797 = sadd.s32 %s792, %s796
          %s798 = smul.addr %s797, 64
          %s799 = scalar_lea.hbm %s4, %s798
          %s800 = sshll.u32 %s783, 4
          %s801 = int_to_ptr.vmem [resolvable:$true] %s800
          %806 = dma.vmem_to_hbm [thread:$0]  %s801, 512, %s799, %s780, 64, 64, 4
        $region56: #{tpu_custom_call.1} parent=35 // pred_fallthru
          _
        // Predicated region
        $region57: #{tpu_custom_call.1} parent=35 // pred_check
          %p807 = pneg %p193
        $region58: #{tpu_custom_call.1} parent=35 // pred_check_branch
          %809 = sbr.rel (%p807) target = $region60
        $region59: #{tpu_custom_call.1} parent=35 // pred_region
          %s810 = smul.u32 8, %s29
          %s812 = ssub.s32 512, 512
          %813 = vsyncadd %s785, %s812
          %s814 = smul.addr %s30, 8
          %s815 = sadd.s32 %s810, %s814
          %s816 = smul.addr %s815, 64
          %s817 = scalar_lea.hbm %s5, %s816
          %s818 = sshll.u32 %s788, 4
          %s819 = int_to_ptr.vmem [resolvable:$true] %s818
          %824 = dma.vmem_to_hbm [thread:$0]  %s819, 512, %s817, %s785, 64, 64, 4
        $region60: #{tpu_custom_call.1} parent=35 // pred_fallthru
          _
      $region36: #{tpu_custom_call.1} parent=5 // pred_fallthru
        _
      %p825 = scmp.le.s32.totalorder 2, %s20
      // Predicated region
      $region61: #{tpu_custom_call.1} parent=5 // pred_check
        %p826 = pneg %p825
      $region62: #{tpu_custom_call.1} parent=5 // pred_check_branch
        %828 = sbr.rel (%p826) target = $region64
      $region63: #{tpu_custom_call.1} parent=5 // pred_region
        %s829 = ssub.s32 %s20, 2
        // Predicated region
        $region65: #{tpu_custom_call.1} parent=63 // pred_check
          %p830 = pneg %p171
        $region66: #{tpu_custom_call.1} parent=63 // pred_check_branch
          %832 = sbr.rel (%p830) target = $region68
        $region67: #{tpu_custom_call.1} parent=63 // pred_region
          %s833 = sand.u32 %s156, 1
          %s834 = scalar_lea.sflag [#allocation4], %s833
          %s835 = sand.u32 %s156, 1
          %s836 = smul.addr %s835, 32
          %s837 = scalar_lea.vmem [#allocation9], %s836
          %838 = dma.done %s834, 512
        $region68: #{tpu_custom_call.1} parent=63 // pred_fallthru
          _
        // Predicated region
        $region69: #{tpu_custom_call.1} parent=63 // pred_check
          %p839 = pneg %p199
        $region70: #{tpu_custom_call.1} parent=63 // pred_check_branch
          %841 = sbr.rel (%p839) target = $region72
        $region71: #{tpu_custom_call.1} parent=63 // pred_region
          %s842 = sand.u32 %s184, 1
          %s843 = scalar_lea.sflag [#allocation11], %s842
          %s844 = sand.u32 %s184, 1
          %s845 = smul.addr %s844, 32
          %s846 = scalar_lea.vmem [#allocation10], %s845
          %847 = dma.done %s843, 512
        $region72: #{tpu_custom_call.1} parent=63 // pred_fallthru
          _
      $region64: #{tpu_custom_call.1} parent=5 // pred_fallthru
        _
    $region6: #{tpu_custom_call.1} parent=1 // loop_footer
      %s24 = sadd.s32 1, %s20
    $region7: #{tpu_custom_call.1} parent=1 // loop_footer_branch
      %19 = sbr.rel target = $region3
    $region8: #{tpu_custom_call.1} parent=1 // loop_exit
      _
    %848 = vsyncpa [#allocation3], 1
    %s849 = scalar_lea.sflag [#allocation3], 1
    %850 = vsyncpa %s849, 1
    %851 = vsyncpa [#allocation6], 1
    %852 = vsyncpa [#allocation4], 1
    %s853 = scalar_lea.sflag [#allocation4], 1
    %854 = vsyncpa %s853, 1
    %855 = vsyncpa [#allocation11], 1
    %s856 = scalar_lea.sflag [#allocation11], 1
    %857 = vsyncpa %s856, 1

</llo_original>
